<compile_context>
chip_gen: v5e
topology: v5e:2x2
jax: 0.10.0
libtpu: 0.0.40
codegen_flags: <defaults>
</compile_context>

<pallas_src>
import math

import jax
import jax.numpy as jnp
from jax.experimental import pallas as pl
from jax.experimental.pallas import tpu as pltpu


# ----------------------------------------------------------------------------
# Kernel: one grid step adds the (sublane-broadcast) PE tile to an x tile.
# ----------------------------------------------------------------------------
def _pos_enc_add_kernel(x_ref, pe_ref, out_ref):
    # x_ref  : (block_rows, block_cols)   tile of the flattened input
    # pe_ref : (1,          block_cols)   positional-encoding tile (broadcast)
    # out_ref: (block_rows, block_cols)
    out_ref[...] = (x_ref[...] + pe_ref[...]).astype(out_ref.dtype)


# ----------------------------------------------------------------------------
# Buffer construction (equivalent of PositionalEncoding.__init__).
# ----------------------------------------------------------------------------
def make_positional_encoding_table(d_model, max_len=7000, dtype=jnp.float32):
    """Returns pe of shape (max_len, d_model), matching the torch buffer
    pe[:, 0, :]: sin on even columns, cos on odd columns.  Handles odd
    d_model (cos fills only d_model // 2 columns)."""
    position = jnp.arange(max_len, dtype=jnp.float32)[:, None]            # (max_len, 1)
    div_term = jnp.exp(jnp.arange(0, d_model, 2, dtype=jnp.float32)
                       * (-math.log(10000.0) / d_model))                  # (ceil(D/2),)
    angles = position * div_term                                          # (max_len, ceil(D/2))
    pe = jnp.zeros((max_len, d_model), jnp.float32)
    pe = pe.at[:, 0::2].set(jnp.sin(angles))
    pe = pe.at[:, 1::2].set(jnp.cos(angles[:, : d_model // 2]))
    return pe.astype(dtype)


# ----------------------------------------------------------------------------
# Forward wrapper (equivalent of PositionalEncoding.forward).
# ----------------------------------------------------------------------------
def positional_encoding_forward(
    x,
    pe_table,
    *,
    vmem_block_bytes=2 * 1024 * 1024,   # per pipelined buffer; safe on v5e/v6e/v7x
    small_input_bytes=1 << 20,          # below this, fused XLA add beats a kernel launch
    force_pallas=False,
    donate_x=False,
):
    """out[i, j, :] = x[i, j, :] + pe_table[j, :]  (the torch forward with the
    two cancelling transposes removed)."""
    I, J, D = x.shape
    assert pe_table.shape[1] == D, (pe_table.shape, D)
    assert J <= pe_table.shape[0], (J, pe_table.shape)

    # Torch type promotion: half/bf16 x + float32 buffer -> float32 output.
    out_dtype = jnp.result_type(x.dtype, pe_table.dtype)

    # ---- small-input fast path -------------------------------------------
    total_bytes = I * J * D * jnp.dtype(out_dtype).itemsize
    if not force_pallas and total_bytes < small_input_bytes:
        return (x + pe_table[:J][None, :, :]).astype(out_dtype)

    # ---- lane-dense flattening -------------------------------------------
    cols = J * D
    x_2d = x.reshape(I, cols)                         # free reshape (contiguous trailing dims)
    pe_2d = pe_table[:J].reshape(1, cols)             # keep pe dtype -> promote in-kernel

    itemsize_out = jnp.dtype(out_dtype).itemsize
    min_itemsize = min(jnp.dtype(x.dtype).itemsize,
                       jnp.dtype(pe_2d.dtype).itemsize,
                       itemsize_out)
    sublane = max(8, 32 // max(1, min_itemsize))      # 8 (f32) / 16 (bf16) / 32 (int8)

    # ---- column (lane) tiling: only needed when a single sublane-tile of
    # full-width rows would not fit the per-buffer budget ---------------------
    row_quantum = sublane if I > sublane else I
    block_cols = cols
    while block_cols > 128 and row_quantum * block_cols * itemsize_out > vmem_block_bytes:
        block_cols = max(128, ((block_cols // 2) // 128) * 128)

    # ---- row (sublane) tiling ---------------------------------------------
    block_rows = max(1, vmem_block_bytes // (block_cols * itemsize_out))
    # Keep >= ~4 grid steps when possible so "parallel" can shard across the
    # two TensorCores on v7x (harmless elsewhere), but never below one tile.
    block_rows = min(block_rows, max(pl.cdiv(I, 4), sublane))
    if block_rows >= I:
        block_rows = I                                # full extent: always a legal block dim
    else:
        block_rows = max(sublane, (block_rows // sublane) * sublane)
        block_rows = min(block_rows, I)

    grid = (pl.cdiv(I, block_rows), pl.cdiv(cols, block_cols))   # ragged blocks masked by Pallas

    call_kwargs = {}
    if donate_x and out_dtype == x.dtype:
        # No bandwidth change, but removes the extra HBM allocation for out.
        call_kwargs["input_output_aliases"] = {0: 0}

    out_2d = pl.pallas_call(
        _pos_enc_add_kernel,
        out_shape=jax.ShapeDtypeStruct((I, cols), out_dtype),
        grid_spec=pl.GridSpec(
            grid=grid,
            in_specs=[
                pl.BlockSpec((block_rows, block_cols), lambda i, j: (i, j)),  # x tile
                pl.BlockSpec((1, block_cols), lambda i, j: (0, j)),           # pe tile (constant row)
            ],
            out_specs=pl.BlockSpec((block_rows, block_cols), lambda i, j: (i, j)),
        ),
        compiler_params=pltpu.CompilerParams(
            dimension_semantics=("parallel", "parallel"),  # pure elementwise, no reduction axis
            vmem_limit_bytes=32 * 1024 * 1024,             # headroom on v5e; <= defaults on v6e/v7x
        ),
        # TODO(synk): pe's index_map is constant; pipeline_mode=pl.Buffered(1) on its
        # BlockSpec would drop its second VMEM buffer (minor win, left at default).
        **call_kwargs,
    )(x_2d, pe_2d)

    return out_2d.reshape(I, J, D)


# ----------------------------------------------------------------------------
# Pure-JAX reference that mirrors the torch forward line by line.
# ----------------------------------------------------------------------------
def _reference_forward(x, pe_table):
    pe = pe_table[:, None, :]                    # (max_len, 1, d_model) buffer
    xt = jnp.transpose(x, (1, 0, 2))             # x.transpose(1, 0)
    xt = xt + pe[: xt.shape[0]]                  # x + pe[:x.size(0)]
    return jnp.transpose(xt, (1, 0, 2))          # x.transpose(1, 0)


if __name__ == "__main__":
    key = jax.random.PRNGKey(0)
    k1, k2 = jax.random.split(key)

    # --- small demo shape (batch=2, seq=8, d_model=32), Pallas path forced ---
    batch, seq, d_model = 2, 8, 32
    pe_table = make_positional_encoding_table(d_model, max_len=7000)
    x = jax.random.normal(k1, (batch, seq, d_model), jnp.float32)

    out = jax.block_until_ready(
        positional_encoding_forward(x, pe_table, force_pallas=True))
    ref = _reference_forward(x, pe_table)
    assert out.shape == (batch, seq, d_model), out.shape
    assert out.dtype == ref.dtype, (out.dtype, ref.dtype)
    assert jnp.allclose(out, ref, atol=1e-6, rtol=1e-6), \
        float(jnp.max(jnp.abs(out - ref)))

    # --- multi-block grid with a ragged last row-block (exercises cdiv path) ---
    pe_table64 = make_positional_encoding_table(64, max_len=7000)
    x_big = jax.random.normal(k2, (20, 16, 64), jnp.float32)
    out2 = jax.block_until_ready(
        positional_encoding_forward(x_big, pe_table64, force_pallas=True))
    ref2 = _reference_forward(x_big, pe_table64)
    assert jnp.allclose(out2, ref2, atol=1e-6, rtol=1e-6), \
        float(jnp.max(jnp.abs(out2 - ref2)))

    # --- default call on the tiny shape takes the fused-XLA fast path ---
    out3 = jax.block_until_ready(positional_encoding_forward(x, pe_table))
    assert jnp.allclose(out3, ref, atol=1e-6, rtol=1e-6)

    print("KERNEL_OK")
</pallas_src>

<mosaic_0001>
module attributes {stable_mosaic.version = 11 : i64} {
  func.func @_pos_enc_add_kernel(%arg0: i32, %arg1: i32, %arg2: memref<2x256xf32, #tpu.memory_space<vmem>>, %arg3: memref<1x256xf32, #tpu.memory_space<vmem>>, %arg4: memref<2x256xf32, #tpu.memory_space<vmem>>) attributes {dimension_semantics = [#tpu.dimension_semantics<parallel>, #tpu.dimension_semantics<parallel>], iteration_bounds = array<i64: 1, 1>, scalar_prefetch = 0 : i64, scratch_operands = 0 : i64, tpu.core_type = #tpu.core_type<tc>, window_params = [{transform_indices = @transform_0, window_bounds = array<i64: 2, 256>}, {transform_indices = @transform_1, window_bounds = array<i64: 1, 256>}, {transform_indices = @transform_2, window_bounds = array<i64: 2, 256>}]} {
    %c0 = arith.constant 0 : index
    %c0_0 = arith.constant 0 : index
    %0 = vector.load %arg2[%c0, %c0_0] : memref<2x256xf32, #tpu.memory_space<vmem>>, vector<2x256xf32>
    %c0_1 = arith.constant 0 : index
    %c0_2 = arith.constant 0 : index
    %1 = vector.load %arg3[%c0_1, %c0_2] : memref<1x256xf32, #tpu.memory_space<vmem>>, vector<1x256xf32>
    %2 = vector.broadcast %1 : vector<1x256xf32> to vector<2x256xf32>
    %3 = arith.addf %0, %2 : vector<2x256xf32>
    %c0_3 = arith.constant 0 : index
    %c0_4 = arith.constant 0 : index
    %4 = vector.load %arg4[%c0_3, %c0_4] : memref<2x256xf32, #tpu.memory_space<vmem>>, vector<2x256xf32>
    tpu.vector_store %arg4[%c0_3, %c0_4], %3 {strides = array<i32>} : memref<2x256xf32, #tpu.memory_space<vmem>>, vector<2x256xf32>,
    return
  }
  func.func @transform_0(%arg0: i32, %arg1: i32) -> (i32, i32) {
    %c0_i32 = arith.constant 0 : i32
    return %arg0, %arg1 : i32, i32
  }
  func.func @transform_1(%arg0: i32, %arg1: i32) -> (i32, i32) {
    %c0_i32 = arith.constant 0 : i32
    %c0_i32_0 = arith.constant 0 : i32
    return %c0_i32, %arg1 : i32, i32
  }
  func.func @transform_2(%arg0: i32, %arg1: i32) -> (i32, i32) {
    %c0_i32 = arith.constant 0 : i32
    return %arg0, %arg1 : i32, i32
  }
}

</mosaic_0001>

<llo_original>
// kernel: tpu_custom_call.1
$region0: #{tpu_custom_call.1}
  #allocation0 [shape = 'u32[]', space=smem, size = 0x4, offset = 0x4, fixed_abs, tag = 'smem constant byte address 0x4 - core index']
  #allocation1 [shape = 'u32[72,128]{1,0:T(1,128)}', space=vmem, size = 0x9000, scoped, tag = 'internal scratch']
  %s0 = inlined_call_operand.hbm [shape: f32[2,256], index: 0, kind: input, shape index: {}]
  %s1 = inlined_call_operand.hbm [shape: f32[1,256], index: 1, kind: input, shape index: {}]
  %s2 = inlined_call_operand.hbm [shape: f32[2,256], index: 2, kind: output, shape index: {}]
  %s3 = sld [smem:[#allocation0]]
  $region26: #{tpu_custom_call.1} parent=0
    _
  %s5 = ssub.s32 1, %s3
  %s6 = scalar_select 0, %s5, %s3
  $region1: #{tpu_custom_call.1} parent=0
    #allocation2 [shape = 'u8[2048]{0}', space=vmem, size = 0x800, scoped, tag = 'input window, operand 0, single buffered']
    #allocation3 [shape = 's32[1]{0}', space=sflag, size = 0x4, scoped, tag = 'scoped memory for tpu_custom_call.1']
    #allocation4 [shape = 's32[1]{0}', space=sflag, size = 0x4, scoped, tag = 'scoped memory for tpu_custom_call.1']
    #allocation5 [shape = 'u8[1024]{0}', space=vmem, size = 0x400, scoped, tag = 'input window, operand 1, single buffered']
    #allocation6 [shape = 's32[1]{0}', space=sflag, size = 0x4, scoped, tag = 'scoped memory for tpu_custom_call.1']
    #allocation7 [shape = 'u8[2048]{0}', space=vmem, size = 0x800, scoped, tag = 'output window, operand 0, single buffered']
    %7 = vsyncpa [#allocation3], 0
    %8 = vsyncpa [#allocation6], 0
    %9 = vsyncpa [#allocation4], 0
    // Predicated region
    $region2: #{tpu_custom_call.1} parent=1 // pred_check
      _
    $region3: #{tpu_custom_call.1} parent=1 // pred_check_branch
      %11 = sbr.rel (0) target = $region5
    $region4: #{tpu_custom_call.1} parent=1 // pred_region
      %13 = vsyncadd [#allocation3], 0
      %s15 = sshll.u32 %s0, 4
      %s16 = int_to_ptr.hbm [resolvable:$true] %s15
      %s17 = sshll.u32 [#allocation2], 4
      %s18 = int_to_ptr.vmem [resolvable:$true] %s17
      %20 = dma.hbm_to_vmem [thread:$0]  %s16, 64, %s18, [#allocation3]
    $region5: #{tpu_custom_call.1} parent=1 // pred_fallthru
      _
    // Predicated region
    $region6: #{tpu_custom_call.1} parent=1 // pred_check
      _
    $region7: #{tpu_custom_call.1} parent=1 // pred_check_branch
      %22 = sbr.rel (0) target = $region9
    $region8: #{tpu_custom_call.1} parent=1 // pred_region
      %24 = vsyncadd [#allocation6], 0
      %s26 = sshll.u32 %s1, 4
      %s27 = int_to_ptr.hbm [resolvable:$true] %s26
      %s28 = sshll.u32 [#allocation5], 4
      %s29 = int_to_ptr.vmem [resolvable:$true] %s28
      %31 = dma.hbm_to_vmem [thread:$0]  %s27, 32, %s29, [#allocation6]
    $region9: #{tpu_custom_call.1} parent=1 // pred_fallthru
      _
    // Predicated region
    $region10: #{tpu_custom_call.1} parent=1 // pred_check
      _
    $region11: #{tpu_custom_call.1} parent=1 // pred_check_branch
      %33 = sbr.rel (0) target = $region13
    $region12: #{tpu_custom_call.1} parent=1 // pred_region
      %35 = dma.done [#allocation3], 64
    $region13: #{tpu_custom_call.1} parent=1 // pred_fallthru
      _
    // Predicated region
    $region14: #{tpu_custom_call.1} parent=1 // pred_check
      _
    $region15: #{tpu_custom_call.1} parent=1 // pred_check_branch
      %37 = sbr.rel (0) target = $region17
    $region16: #{tpu_custom_call.1} parent=1 // pred_region
      %39 = dma.done [#allocation6], 32
    $region17: #{tpu_custom_call.1} parent=1 // pred_fallthru
      _
    %v40 = vld [vmem:[#allocation2] sm:$0xf]
    %v41 = vld [vmem:[#allocation5] sm:$0x3]
    %v43 = vperm.slane %v41, 0
    %v44 = vperm.slane %v41, 1
    %v45 = vrot.slane %v44, 6
    %vm46 = vcmask 1041408
    %v47 = vsel %vm46, %v43, %v45
    %v49 = vadd.f32 %v40, %v47
    %50 = vst [vmem:[#allocation7] sm:$0xf] %v49
    // Predicated region
    $region18: #{tpu_custom_call.1} parent=1 // pred_check
      _
    $region19: #{tpu_custom_call.1} parent=1 // pred_check_branch
      %52 = sbr.rel (0) target = $region21
    $region20: #{tpu_custom_call.1} parent=1 // pred_region
      %54 = vsyncadd [#allocation4], 0
      %s56 = sshll.u32 [#allocation7], 4
      %s57 = int_to_ptr.vmem [resolvable:$true] %s56
      %s58 = sshll.u32 %s2, 4
      %s59 = int_to_ptr.hbm [resolvable:$true] %s58
      %61 = dma.vmem_to_hbm [thread:$0]  %s57, 64, %s59, [#allocation4]
    $region21: #{tpu_custom_call.1} parent=1 // pred_fallthru
      _
    // Predicated region
    $region22: #{tpu_custom_call.1} parent=1 // pred_check
      _
    $region23: #{tpu_custom_call.1} parent=1 // pred_check_branch
      %63 = sbr.rel (0) target = $region25
    $region24: #{tpu_custom_call.1} parent=1 // pred_region
      %65 = dma.done [#allocation4], 64
    $region25: #{tpu_custom_call.1} parent=1 // pred_fallthru
      _
    %66 = vsyncpa [#allocation3], 1
    %67 = vsyncpa [#allocation6], 1
    %68 = vsyncpa [#allocation4], 1

</llo_original>
